<compile_context>
chip_gen: v6e
topology: v6e:2x2x1
jax: 0.10.0
libtpu: 0.0.40
codegen_flags: <defaults>
</compile_context>

<pallas_src>
import functools

import jax
import jax.numpy as jnp
from jax.experimental import pallas as pl
from jax.experimental.pallas import tpu as pltpu


# ---------------------------------------------------------------------------
# Kernel bodies
# ---------------------------------------------------------------------------

def _mlp_head(pooled_f32, w1_ref, b1_ref, w2_ref, b2_ref, out_ref):
    """tanh(pooled @ W1 + b1) @ W2 + b2, all math in f32."""
    w1 = w1_ref[...].astype(jnp.float32)
    b1 = b1_ref[...].astype(jnp.float32)
    w2 = w2_ref[...].astype(jnp.float32)
    b2 = b2_ref[...].astype(jnp.float32)
    z = jnp.tanh(jnp.dot(pooled_f32, w1, preferred_element_type=jnp.float32) + b1)
    logits = jnp.dot(z, w2, preferred_element_type=jnp.float32) + b2
    out_ref[...] = logits.astype(out_ref.dtype)


def _token_kernel(tok_ref, w1_ref, b1_ref, w2_ref, b2_ref, out_ref):
    # 'first'/'last' pooling: the wrapper already selected the one token, so the
    # kernel only ever sees [Bt, H].
    _mlp_head(tok_ref[...].astype(jnp.float32),
              w1_ref, b1_ref, w2_ref, b2_ref, out_ref)


def _seq_pool_kernel(hidden_ref, w1_ref, b1_ref, w2_ref, b2_ref, out_ref, acc_ref,
                     *, pooling, seq_len):
    # grid = (batch_blocks, seq_blocks); seq axis (innermost) is the reduction.
    s = pl.program_id(1)

    @pl.when(s == 0)
    def _init():
        if pooling == "max":
            acc_ref[...] = jnp.full(acc_ref.shape, -jnp.inf, acc_ref.dtype)
        else:
            acc_ref[...] = jnp.zeros(acc_ref.shape, acc_ref.dtype)

    h = hidden_ref[...].astype(jnp.float32)          # [Bt, St, H], f32 accumulate
    if pooling == "max":
        acc_ref[...] = jnp.maximum(acc_ref[...], jnp.max(h, axis=1))
    else:  # mean
        acc_ref[...] = acc_ref[...] + jnp.sum(h, axis=1)

    @pl.when(s == pl.num_programs(1) - 1)
    def _finalize():
        pooled = acc_ref[...]
        if pooling == "mean":
            pooled = pooled * (1.0 / float(seq_len))
        _mlp_head(pooled, w1_ref, b1_ref, w2_ref, b2_ref, out_ref)


# ---------------------------------------------------------------------------
# Tile selection
# ---------------------------------------------------------------------------

def _pick_batch_tile(B):
    # Split the batch across >= 2 grid steps (v7x megacore) when it tiles
    # cleanly into sublane-aligned blocks; otherwise keep one block of B
    # (2-D blocks: batch dim must be a multiple of 8 or equal to B).
    for bt in (256, 128, 64, 32, 16, 8):
        if B % bt == 0 and B // bt >= 2:
            return bt
    return B


def _pick_seq_tile(bt, S, H, itemsize, budget_bytes=4 << 20):
    # Largest S tile that divides S, is a multiple of 8 (or == S), and keeps a
    # hidden block <= ~4 MiB so the double-buffered pipeline fits scoped VMEM
    # on v5e/v6e/v7x alike.
    if bt * S * H * itemsize <= budget_bytes:
        return S
    st = max(8, (budget_bytes // (bt * H * itemsize)) // 8 * 8)
    while st >= 8:
        if S % st == 0:
            return int(st)
        st -= 8
    return S


# ---------------------------------------------------------------------------
# Wrapper
# ---------------------------------------------------------------------------

def gpt_mini_classifier(hidden, mask, params, *, pooling="first"):
    """Pallas version of GptMiniClassifier.forward.

    hidden: [B, S, H] (f32 or bf16)
    mask:   unused (the PyTorch forward never reads it; mean/max include padding)
    params: w1 [H,H] (in,out), b1 [H], w2 [H,L] (in,out), b2 [L]
    returns logits [B, L] float32
    """
    del mask  # deliberately unused to match the reference forward
    B, S, H = hidden.shape
    L = params["w2"].shape[1]

    w1 = params["w1"]
    b1 = params["b1"].reshape(1, H)
    w2 = params["w2"]
    b2 = params["b2"].reshape(1, L)

    bt = _pick_batch_tile(B)
    nb = B // bt

    weight_specs = [
        pl.BlockSpec((H, H), lambda *_: (0, 0)),
        pl.BlockSpec((1, H), lambda *_: (0, 0)),
        pl.BlockSpec((H, L), lambda *_: (0, 0)),
        pl.BlockSpec((1, L), lambda *_: (0, 0)),
    ]
    weight_bytes = sum(int(w.size) * w.dtype.itemsize for w in (w1, b1, w2, b2))
    out_bytes = B * L * 4
    mlp_flops = 2 * B * H * H + 2 * B * H * L

    if pooling in ("mean", "max"):
        st = _pick_seq_tile(bt, S, H, hidden.dtype.itemsize)
        ns = S // st
        kernel = functools.partial(_seq_pool_kernel, pooling=pooling, seq_len=S)
        cost = pl.CostEstimate(
            flops=mlp_flops + B * S * H,
            transcendentals=B * H,
            bytes_accessed=B * S * H * hidden.dtype.itemsize + weight_bytes + out_bytes,
        )
        return pl.pallas_call(
            kernel,
            out_shape=jax.ShapeDtypeStruct((B, L), jnp.float32),
            grid=(nb, ns),
            in_specs=[pl.BlockSpec((bt, st, H), lambda b, s: (b, s, 0))] + weight_specs,
            out_specs=pl.BlockSpec((bt, L), lambda b, s: (b, 0)),
            scratch_shapes=[pltpu.VMEM((bt, H), jnp.float32)],
            compiler_params=pltpu.CompilerParams(
                dimension_semantics=("parallel", "arbitrary"),
                vmem_limit_bytes=32 << 20),
            cost_estimate=cost,
        )(hidden, w1, b1, w2, b2)

    # 'first' / 'last': only the single needed token is read from HBM.
    tok = hidden[:, S - 1, :] if pooling == "last" else hidden[:, 0, :]
    cost = pl.CostEstimate(
        flops=mlp_flops,
        transcendentals=B * H,
        bytes_accessed=B * H * hidden.dtype.itemsize + weight_bytes + out_bytes,
    )
    return pl.pallas_call(
        _token_kernel,
        out_shape=jax.ShapeDtypeStruct((B, L), jnp.float32),
        grid=(nb,),
        in_specs=[pl.BlockSpec((bt, H), lambda b: (b, 0))] + weight_specs,
        out_specs=pl.BlockSpec((bt, L), lambda b: (b, 0)),
        compiler_params=pltpu.CompilerParams(
            dimension_semantics=("parallel",),
            vmem_limit_bytes=32 << 20),
        cost_estimate=cost,
    )(tok, w1, b1, w2, b2)


# ---------------------------------------------------------------------------
# Pure-JAX reference (matches the PyTorch forward)
# ---------------------------------------------------------------------------

def _reference(hidden, params, pooling):
    h = hidden.astype(jnp.float32)
    if pooling == "mean":
        pooled = jnp.mean(h, axis=1)
    elif pooling == "max":
        pooled = jnp.max(h, axis=1)
    elif pooling == "last":
        pooled = h[:, -1, :]
    else:
        pooled = h[:, 0, :]
    z = jnp.tanh(pooled @ params["w1"].astype(jnp.float32)
                 + params["b1"].astype(jnp.float32))
    return z @ params["w2"].astype(jnp.float32) + params["b2"].astype(jnp.float32)


if __name__ == "__main__":
    # Small shapes consistent with the module: batch=2, seq=8, hidden=32, labels=8
    B, S, H, L = 2, 8, 32, 8

    key = jax.random.PRNGKey(0)
    k_h, k_w1, k_b1, k_w2, k_b2 = jax.random.split(key, 5)

    hidden = jax.random.normal(k_h, (B, S, H), dtype=jnp.float32)
    mask = jnp.ones((B, S), dtype=jnp.int32)  # unused by the forward pass

    # nn.Linear-style uniform init, stored as [in, out] so kernel does x @ W + b.
    bound1 = 1.0 / (H ** 0.5)
    params = {
        "w1": jax.random.uniform(k_w1, (H, H), jnp.float32, -bound1, bound1),
        "b1": jax.random.uniform(k_b1, (H,), jnp.float32, -bound1, bound1),
        "w2": jax.random.uniform(k_w2, (H, L), jnp.float32, -bound1, bound1),
        "b2": jax.random.uniform(k_b2, (L,), jnp.float32, -bound1, bound1),
    }

    # Check every pooling branch against the reference.
    for pooling in ("first", "last", "mean", "max"):
        out = jax.block_until_ready(
            gpt_mini_classifier(hidden, mask, params, pooling=pooling))
        ref = _reference(hidden, params, pooling)
        assert out.shape == (B, L)
        assert jnp.allclose(out, ref, atol=1e-5, rtol=1e-5), f"mismatch ({pooling})"

    # bf16 hidden path (half the HBM bytes on the dominant read; f32 accumulate).
    hidden_bf16 = hidden.astype(jnp.bfloat16)
    out_bf16 = jax.block_until_ready(
        gpt_mini_classifier(hidden_bf16, mask, params, pooling="mean"))
    ref_bf16 = _reference(hidden_bf16, params, "mean")
    assert jnp.allclose(out_bf16, ref_bf16, atol=1e-4, rtol=1e-4), "mismatch (bf16 mean)"

    print("KERNEL_OK")
</pallas_src>

<mosaic_0001>
module attributes {stable_mosaic.version = 11 : i64} {
  func.func @_token_kernel(%arg0: i32, %arg1: memref<2x32xf32, #tpu.memory_space<vmem>>, %arg2: memref<32x32xf32, #tpu.memory_space<vmem>>, %arg3: memref<1x32xf32, #tpu.memory_space<vmem>>, %arg4: memref<32x8xf32, #tpu.memory_space<vmem>>, %arg5: memref<1x8xf32, #tpu.memory_space<vmem>>, %arg6: memref<2x8xf32, #tpu.memory_space<vmem>>) attributes {dimension_semantics = [#tpu.dimension_semantics<parallel>], iteration_bounds = array<i64: 1>, scalar_prefetch = 0 : i64, scratch_operands = 0 : i64, tpu.core_type = #tpu.core_type<tc>, window_params = [{transform_indices = @transform_0, window_bounds = array<i64: 2, 32>}, {pipeline_mode = #tpu.pipeline_mode<synchronous>, transform_indices = @transform_1, window_bounds = array<i64: 32, 32>}, {pipeline_mode = #tpu.pipeline_mode<synchronous>, transform_indices = @transform_2, window_bounds = array<i64: 1, 32>}, {pipeline_mode = #tpu.pipeline_mode<synchronous>, transform_indices = @transform_3, window_bounds = array<i64: 32, 8>}, {pipeline_mode = #tpu.pipeline_mode<synchronous>, transform_indices = @transform_4, window_bounds = array<i64: 1, 8>}, {transform_indices = @transform_5, window_bounds = array<i64: 2, 8>}]} {
    %c0 = arith.constant 0 : index
    %c0_0 = arith.constant 0 : index
    %0 = vector.load %arg1[%c0, %c0_0] : memref<2x32xf32, #tpu.memory_space<vmem>>, vector<2x32xf32>
    %c0_1 = arith.constant 0 : index
    %c0_2 = arith.constant 0 : index
    %1 = vector.load %arg2[%c0_1, %c0_2] : memref<32x32xf32, #tpu.memory_space<vmem>>, vector<32x32xf32>
    %c0_3 = arith.constant 0 : index
    %c0_4 = arith.constant 0 : index
    %2 = vector.load %arg3[%c0_3, %c0_4] : memref<1x32xf32, #tpu.memory_space<vmem>>, vector<1x32xf32>
    %c0_5 = arith.constant 0 : index
    %c0_6 = arith.constant 0 : index
    %3 = vector.load %arg4[%c0_5, %c0_6] : memref<32x8xf32, #tpu.memory_space<vmem>>, vector<32x8xf32>
    %c0_7 = arith.constant 0 : index
    %c0_8 = arith.constant 0 : index
    %4 = vector.load %arg5[%c0_7, %c0_8] : memref<1x8xf32, #tpu.memory_space<vmem>>, vector<1x8xf32>
    %cst = arith.constant dense<0.000000e+00> : vector<2x32xf32>
    %5 = tpu.matmul %0, %1, %cst {dimension_numbers = #tpu.dot_dimension_numbers<[1], [0], [0], [1], [0, 0, 1, 1], [], []>} : vector<2x32xf32>, vector<32x32xf32>, vector<2x32xf32> -> vector<2x32xf32>
    %6 = vector.broadcast %2 : vector<1x32xf32> to vector<2x32xf32>
    %7 = arith.addf %5, %6 : vector<2x32xf32>
    %8 = math.tanh %7 : vector<2x32xf32>
    %cst_9 = arith.constant dense<0.000000e+00> : vector<2x8xf32>
    %9 = tpu.matmul %8, %3, %cst_9 {dimension_numbers = #tpu.dot_dimension_numbers<[1], [0], [0], [1], [0, 0, 1, 1], [], []>} : vector<2x32xf32>, vector<32x8xf32>, vector<2x8xf32> -> vector<2x8xf32>
    %10 = vector.broadcast %4 : vector<1x8xf32> to vector<2x8xf32>
    %11 = arith.addf %9, %10 : vector<2x8xf32>
    %c0_10 = arith.constant 0 : index
    %c0_11 = arith.constant 0 : index
    %12 = vector.load %arg6[%c0_10, %c0_11] : memref<2x8xf32, #tpu.memory_space<vmem>>, vector<2x8xf32>
    tpu.vector_store %arg6[%c0_10, %c0_11], %11 {strides = array<i32>} : memref<2x8xf32, #tpu.memory_space<vmem>>, vector<2x8xf32>,
    return
  }
  func.func @transform_0(%arg0: i32) -> (i32, i32) {
    %c0_i32 = arith.constant 0 : i32
    %c0_i32_0 = arith.constant 0 : i32
    return %arg0, %c0_i32 : i32, i32
  }
  func.func @transform_1(%arg0: i32) -> (i32, i32) {
    %c0_i32 = arith.constant 0 : i32
    %c0_i32_0 = arith.constant 0 : i32
    %c0_i32_1 = arith.constant 0 : i32
    return %c0_i32, %c0_i32_0 : i32, i32
  }
  func.func @transform_2(%arg0: i32) -> (i32, i32) {
    %c0_i32 = arith.constant 0 : i32
    %c0_i32_0 = arith.constant 0 : i32
    %c0_i32_1 = arith.constant 0 : i32
    return %c0_i32, %c0_i32_0 : i32, i32
  }
  func.func @transform_3(%arg0: i32) -> (i32, i32) {
    %c0_i32 = arith.constant 0 : i32
    %c0_i32_0 = arith.constant 0 : i32
    %c0_i32_1 = arith.constant 0 : i32
    return %c0_i32, %c0_i32_0 : i32, i32
  }
  func.func @transform_4(%arg0: i32) -> (i32, i32) {
    %c0_i32 = arith.constant 0 : i32
    %c0_i32_0 = arith.constant 0 : i32
    %c0_i32_1 = arith.constant 0 : i32
    return %c0_i32, %c0_i32_0 : i32, i32
  }
  func.func @transform_5(%arg0: i32) -> (i32, i32) {
    %c0_i32 = arith.constant 0 : i32
    %c0_i32_0 = arith.constant 0 : i32
    return %arg0, %c0_i32 : i32, i32
  }
}

</mosaic_0001>

<llo_original>
// kernel: tpu_custom_call.1
$region0: #{tpu_custom_call.1}
  #allocation0 [shape = 'u32[]', space=smem, size = 0x4, offset = 0x4, fixed_abs, tag = 'smem constant byte address 0x4 - core index']
  #allocation1 [shape = 'u32[144,128]{1,0:T(1,128)}', space=vmem, size = 0x12000, scoped, tag = 'internal scratch']
  %s0 = inlined_call_operand.vmem [shape: f32[2,32], index: 0, kind: input, shape index: {}]
  %s1 = inlined_call_operand.vmem [shape: f32[32,32], index: 1, kind: input, shape index: {}]
  %s2 = inlined_call_operand.vmem [shape: f32[1,32], index: 2, kind: input, shape index: {}]
  %s3 = inlined_call_operand.vmem [shape: f32[32,8], index: 3, kind: input, shape index: {}]
  %s4 = inlined_call_operand.vmem [shape: f32[1,8], index: 4, kind: input, shape index: {}]
  %s5 = inlined_call_operand.hbm [shape: f32[2,8], index: 5, kind: output, shape index: {}]
  %s6 = sld [smem:[#allocation0]]
  $region30: #{tpu_custom_call.1} parent=0
    _
  %s8 = ssub.s32 1, %s6
  %s9 = scalar_select 0, %s8, %s6
  $region1: #{tpu_custom_call.1} parent=0
    #allocation2 [shape = 'u8[1024]{0}', space=vmem, size = 0x400, scoped, tag = 'output window, operand 0, single buffered']
    #allocation3 [shape = 's32[1]{0}', space=sflag, size = 0x4, scoped, tag = 'scoped memory for tpu_custom_call.1']
    %10 = vsyncpa [#allocation3], 0
    // Predicated region
    $region2: #{tpu_custom_call.1} parent=1 // pred_check
      _
    $region3: #{tpu_custom_call.1} parent=1 // pred_check_branch
      %12 = sbr.rel (0) target = $region5
    $region4: #{tpu_custom_call.1} parent=1 // pred_region
      _
    $region5: #{tpu_custom_call.1} parent=1 // pred_fallthru
      _
    // Predicated region
    $region6: #{tpu_custom_call.1} parent=1 // pred_check
      _
    $region7: #{tpu_custom_call.1} parent=1 // pred_check_branch
      %14 = sbr.rel (0) target = $region9
    $region8: #{tpu_custom_call.1} parent=1 // pred_region
      _
    $region9: #{tpu_custom_call.1} parent=1 // pred_fallthru
      _
    // Predicated region
    $region10: #{tpu_custom_call.1} parent=1 // pred_check
      _
    $region11: #{tpu_custom_call.1} parent=1 // pred_check_branch
      %16 = sbr.rel (0) target = $region13
    $region12: #{tpu_custom_call.1} parent=1 // pred_region
      _
    $region13: #{tpu_custom_call.1} parent=1 // pred_fallthru
      _
    // Predicated region
    $region14: #{tpu_custom_call.1} parent=1 // pred_check
      _
    $region15: #{tpu_custom_call.1} parent=1 // pred_check_branch
      %18 = sbr.rel (0) target = $region17
    $region16: #{tpu_custom_call.1} parent=1 // pred_region
      _
    $region17: #{tpu_custom_call.1} parent=1 // pred_fallthru
      _
    // Predicated region
    $region18: #{tpu_custom_call.1} parent=1 // pred_check
      _
    $region19: #{tpu_custom_call.1} parent=1 // pred_check_branch
      %20 = sbr.rel (0) target = $region21
    $region20: #{tpu_custom_call.1} parent=1 // pred_region
      _
    $region21: #{tpu_custom_call.1} parent=1 // pred_fallthru
      _
    %v21 = vld [vmem:[%s0] sm:$0x3]
    %v22 = vld [vmem:[%s1] sm:$0xff]
    %v23 = vld [vmem:[%s1 + $0x8] sm:$0xff]
    %v24 = vld [vmem:[%s1 + $0x10] sm:$0xff]
    %v25 = vld [vmem:[%s1 + $0x18] sm:$0xff]
    %v26 = vld [vmem:[%s2] sm:$0x1]
    %v27 = vld [vmem:[%s3] sm:$0xff]
    %v28 = vld [vmem:[%s3 + $0x8] sm:$0xff]
    %v29 = vld [vmem:[%s3 + $0x10] sm:$0xff]
    %v30 = vld [vmem:[%s3 + $0x18] sm:$0xff]
    %v31 = vld [vmem:[%s4] sm:$0x1]
    %v33 = vlaneseq
    %v34 = vshrl.u32 %v33, 7
    %v35 = vsub.s32 0, %v34
    %v36 = vrot.slane %v26, %v35
    %vm38 = vcmask 261120
    %v40 = vsel %vm38, %v21, 0
    %42 = vmatprep.subr.mxu0 0.0
    %43 = vmatpush1.msra.mxu0 0.0
    %44 = vmatprep.subr.mxu0 0.0
    %45 = vmatpush1.msra.mxu0 0.0
    %46 = vmatprep.subr.mxu0 0.0
    %47 = vmatpush1.msra.mxu0 0.0
    %48 = vmatprep.subr.mxu0 0.0
    %49 = vmatpush1.msra.mxu0 0.0
    %50 = vmatprep.subr.mxu0 0.0
    %51 = vmatpush1.msra.mxu0 0.0
    %52 = vmatprep.subr.mxu0 0.0
    %53 = vmatpush1.msra.mxu0 0.0
    %54 = vmatprep.subr.mxu0 0.0
    %55 = vmatpush1.msra.mxu0 0.0
    %56 = vmatprep.subr.mxu0 0.0
    %57 = vmatpush1.msra.mxu0 0.0
    %58 = vmatprep.subr.mxu0 0.0
    %59 = vmatpush1.msra.mxu0 0.0
    %60 = vmatprep.subr.mxu0 0.0
    %61 = vmatpush1.msra.mxu0 0.0
    %62 = vmatprep.subr.mxu0 0.0
    %63 = vmatpush1.msra.mxu0 0.0
    %64 = vmatprep.subr.mxu0 0.0
    %65 = vmatpush1.msra.mxu0 0.0
    %66 = vmatprep.subr.mxu0 0.0
    %67 = vmatpush1.msra.mxu0 %v25
    %68 = vmatprep.subr.mxu0 0.0
    %69 = vmatpush1.msra.mxu0 %v24
    %70 = vmatprep.subr.mxu0 0.0
    %71 = vmatpush1.msra.mxu0 %v23
    %72 = vmatprep.subr.mxu0 0.0
    %73 = vmatpush1.msra.mxu0 %v22
    %74 = vmatprep.subr.mxu0 0.0
    %75 = vmatpush2.msra.mxu0 0.0
    %76 = vmatprep.subr.mxu0 0.0
    %77 = vmatpush2.msra.mxu0 0.0
    %78 = vmatprep.subr.mxu0 0.0
    %79 = vmatpush2.msra.mxu0 0.0
    %80 = vmatprep.subr.mxu0 0.0
    %81 = vmatpush2.msra.mxu0 0.0
    %82 = vmatprep.subr.mxu0 0.0
    %83 = vmatpush2.msra.mxu0 0.0
    %84 = vmatprep.subr.mxu0 0.0
    %85 = vmatpush2.msra.mxu0 0.0
    %86 = vmatprep.subr.mxu0 0.0
    %87 = vmatpush2.msra.mxu0 0.0
    %88 = vmatprep.subr.mxu0 0.0
    %89 = vmatpush2.msra.mxu0 0.0
    %90 = vmatprep.subr.mxu0 0.0
    %91 = vmatpush2.msra.mxu0 0.0
    %92 = vmatprep.subr.mxu0 0.0
    %93 = vmatpush2.msra.mxu0 0.0
    %94 = vmatprep.subr.mxu0 0.0
    %95 = vmatpush2.msra.mxu0 0.0
    %96 = vmatprep.subr.mxu0 0.0
    %97 = vmatpush2.msra.mxu0 0.0
    %98 = vmatprep.subr.mxu0 0.0
    %99 = vmatpush2.msra.mxu0 0.0
    %100 = vmatprep.subr.mxu0 0.0
    %101 = vmatpush2.msra.mxu0 0.0
    %102 = vmatprep.subr.mxu0 0.0
    %103 = vmatpush2.msra.mxu0 0.0
    %104 = vmatprep.subr.mxu0 0.0
    %105 = vmatpush2.msra.mxu0 0.0
    %106 = vmatprep.mubr.f32.mxu0 0.0
    %107 = vmatmul.mubr.f32.gmra.mxu0 %v40
    %v108 = vpop.f32.mrf.mxu0
    %v109 = vadd.f32 %v36, %v108
    %v110 = vpop.f32.mrf.mxu0
    %111 = vdwg.mxu0
    %v112 = vtanh.pop %v109
    %v114 = vlaneseq
    %v115 = vshrl.u32 %v114, 7
    %v116 = vsub.s32 0, %v115
    %v117 = vrot.slane %v31, %v116
    %v120 = vsel %vm38, %v112, 0
    %122 = vmatprep.subr.mxu0 0.0
    %123 = vmatpush1.msra.mxu0 0.0
    %124 = vmatprep.subr.mxu0 0.0
    %125 = vmatpush1.msra.mxu0 0.0
    %126 = vmatprep.subr.mxu0 0.0
    %127 = vmatpush1.msra.mxu0 0.0
    %128 = vmatprep.subr.mxu0 0.0
    %129 = vmatpush1.msra.mxu0 0.0
    %130 = vmatprep.subr.mxu0 0.0
    %131 = vmatpush1.msra.mxu0 0.0
    %132 = vmatprep.subr.mxu0 0.0
    %133 = vmatpush1.msra.mxu0 0.0
    %134 = vmatprep.subr.mxu0 0.0
    %135 = vmatpush1.msra.mxu0 0.0
    %136 = vmatprep.subr.mxu0 0.0
    %137 = vmatpush1.msra.mxu0 0.0
    %138 = vmatprep.subr.mxu0 0.0
    %139 = vmatpush1.msra.mxu0 0.0
    %140 = vmatprep.subr.mxu0 0.0
    %141 = vmatpush1.msra.mxu0 0.0
    %142 = vmatprep.subr.mxu0 0.0
    %143 = vmatpush1.msra.mxu0 0.0
    %144 = vmatprep.subr.mxu0 0.0
    %145 = vmatpush1.msra.mxu0 0.0
    %146 = vmatprep.subr.mxu0 0.0
    %147 = vmatpush1.msra.mxu0 %v30
    %148 = vmatprep.subr.mxu0 0.0
    %149 = vmatpush1.msra.mxu0 %v29
    %150 = vmatprep.subr.mxu0 0.0
    %151 = vmatpush1.msra.mxu0 %v28
    %152 = vmatprep.subr.mxu0 0.0
    %153 = vmatpush1.msra.mxu0 %v27
    %154 = vmatprep.subr.mxu0 0.0
    %155 = vmatpush2.msra.mxu0 0.0
    %156 = vmatprep.subr.mxu0 0.0
    %157 = vmatpush2.msra.mxu0 0.0
    %158 = vmatprep.subr.mxu0 0.0
    %159 = vmatpush2.msra.mxu0 0.0
    %160 = vmatprep.subr.mxu0 0.0
    %161 = vmatpush2.msra.mxu0 0.0
    %162 = vmatprep.subr.mxu0 0.0
    %163 = vmatpush2.msra.mxu0 0.0
    %164 = vmatprep.subr.mxu0 0.0
    %165 = vmatpush2.msra.mxu0 0.0
    %166 = vmatprep.subr.mxu0 0.0
    %167 = vmatpush2.msra.mxu0 0.0
    %168 = vmatprep.subr.mxu0 0.0
    %169 = vmatpush2.msra.mxu0 0.0
    %170 = vmatprep.subr.mxu0 0.0
    %171 = vmatpush2.msra.mxu0 0.0
    %172 = vmatprep.subr.mxu0 0.0
    %173 = vmatpush2.msra.mxu0 0.0
    %174 = vmatprep.subr.mxu0 0.0
    %175 = vmatpush2.msra.mxu0 0.0
    %176 = vmatprep.subr.mxu0 0.0
    %177 = vmatpush2.msra.mxu0 0.0
    %178 = vmatprep.subr.mxu0 0.0
    %179 = vmatpush2.msra.mxu0 0.0
    %180 = vmatprep.subr.mxu0 0.0
    %181 = vmatpush2.msra.mxu0 0.0
    %182 = vmatprep.subr.mxu0 0.0
    %183 = vmatpush2.msra.mxu0 0.0
    %184 = vmatprep.subr.mxu0 0.0
    %185 = vmatpush2.msra.mxu0 0.0
    %186 = vmatprep.mubr.f32.mxu0 0.0
    %187 = vmatmul.mubr.f32.gmra.mxu0 %v120
    %v188 = vpop.f32.mrf.mxu0
    %v189 = vadd.f32 %v117, %v188
    %v190 = vpop.f32.mrf.mxu0
    %191 = vdwg.mxu0
    %vm192 = vcmask 58368
    %193 = vst.msk [vmem:[#allocation2] sm:$0x3] %vm192, %v189
    // Predicated region
    $region22: #{tpu_custom_call.1} parent=1 // pred_check
      _
    $region23: #{tpu_custom_call.1} parent=1 // pred_check_branch
      %195 = sbr.rel (0) target = $region25
    $region24: #{tpu_custom_call.1} parent=1 // pred_region
      %s197 = ssub.s32 32, 32
      %198 = vsyncadd [#allocation3], %s197
      %s200 = sshll.u32 [#allocation2], 4
      %s201 = int_to_ptr.vmem [resolvable:$true] %s200
      %203 = dma.vmem_to_hbm [thread:$0]  %s201, 32, %s5, [#allocation3]
    $region25: #{tpu_custom_call.1} parent=1 // pred_fallthru
      _
    // Predicated region
    $region26: #{tpu_custom_call.1} parent=1 // pred_check
      _
    $region27: #{tpu_custom_call.1} parent=1 // pred_check_branch
      %205 = sbr.rel (0) target = $region29
    $region28: #{tpu_custom_call.1} parent=1 // pred_region
      %206 = dma.done [#allocation3], 32
    $region29: #{tpu_custom_call.1} parent=1 // pred_fallthru
      _
    %207 = vsyncpa [#allocation3], 1

</llo_original>
